<compile_context>
chip_gen: v7x
topology: tpu7x:2x2x1
jax: 0.10.0
libtpu: 0.0.40
codegen_flags: <defaults>
</compile_context>

<pallas_src>
import functools

import jax
import jax.numpy as jnp
from jax.experimental import pallas as pl
from jax.experimental.pallas import tpu as pltpu


def _round_up(x, m):
    return ((x + m - 1) // m) * m


def net_kernel(x_ref,
               w1a_ref, b1a_ref,
               w2_ref, b2_ref,
               w3_ref, b3_ref,
               wo_ref, bo_ref,
               out_ref, *, h_pad):
    cdt = w1a_ref.dtype  # MXU compute dtype (bf16 by default), f32 accumulation

    def dense(x, w_ref, b_ref):
        return jnp.dot(x.astype(cdt), w_ref[...],
                       preferred_element_type=jnp.float32) + b_ref[...]

    relu = lambda t: jnp.maximum(t, 0.0)

    # Fused first layer: [states | actions] @ blockdiag(w1, wa) -> [h1 | ha]
    z = relu(dense(x_ref[...], w1a_ref, b1a_ref))      # (TB, 2*h_pad)
    h = z[:, :h_pad]                                    # fs layer-1 output
    ha = z[:, h_pad:]                                   # fa output

    # Remaining fs layers.
    h = relu(dense(h, w2_ref, b2_ref))
    h = relu(dense(h, w3_ref, b3_ref))

    # Head on fs(states) + fa(actions); narrow (n_actions-wide) store.
    q = dense(h + ha, wo_ref, bo_ref)
    out_ref[...] = q.astype(out_ref.dtype)


def net_forward(states, actions, params, *, block_b=None,
                matmul_dtype=jnp.bfloat16):
    """Forward pass.  params: dict of (in,out)-layout weights, (1,out) biases.

    block_b: batch tile (rows per grid step), multiple of 8. Default:
             min(512, ceil8(B)) — large tiles amortize the ~0.35 us/step grid
             overhead; VMEM use stays tiny even on v7x's 64 MiB.
    matmul_dtype: dtype fed to the MXU (accumulation is always f32).
    """
    B, n_states = states.shape
    n_act2 = actions.shape[1]                 # 2 * n_actions
    H = params["wo"].shape[0]                 # hidden_dim
    n_actions = params["wo"].shape[1]
    n_in = n_states + n_act2
    h_pad = _round_up(H, 128)                 # lane-native hidden width

    if block_b is None:
        block_b = min(512, _round_up(B, 8))
    block_b = max(8, _round_up(block_b, 8))
    B_pad = _round_up(B, block_b)

    cdt = matmul_dtype
    f32 = jnp.float32

    # Single bf16 input stream: [states | actions]  (cast+concat fuse in XLA).
    x = jnp.concatenate([states, actions], axis=1).astype(cdt)
    if B_pad != B:
        x = jnp.pad(x, ((0, B_pad - B), (0, 0)))

    # --- Parameter prep: fuse layer1/fa, pad hidden dim to h_pad (exact) ---
    w1a = jnp.zeros((n_in, 2 * h_pad), cdt)
    w1a = w1a.at[:n_states, :H].set(params["w1"].astype(cdt))
    w1a = w1a.at[n_states:, h_pad:h_pad + H].set(params["wa"].astype(cdt))
    b1a = jnp.zeros((1, 2 * h_pad), f32)
    b1a = b1a.at[:, :H].set(params["b1"].astype(f32))
    b1a = b1a.at[:, h_pad:h_pad + H].set(params["ba"].astype(f32))

    def pad_wb(w, b):
        wp = jnp.zeros((h_pad, h_pad), cdt).at[:H, :H].set(w.astype(cdt))
        bp = jnp.zeros((1, h_pad), f32).at[:, :H].set(b.astype(f32))
        return wp, bp

    w2, b2 = pad_wb(params["w2"], params["b2"])
    w3, b3 = pad_wb(params["w3"], params["b3"])
    wo = jnp.zeros((h_pad, n_actions), cdt).at[:H, :].set(params["wo"].astype(cdt))
    bo = params["bo"].astype(f32)

    grid = (B_pad // block_b,)

    def batch_map(i):
        return (i, 0)

    def const_map(i):
        return (0, 0)

    in_specs = [
        pl.BlockSpec((block_b, n_in), batch_map),   # streamed [states|actions]
        pl.BlockSpec(w1a.shape, const_map),         # weights/biases: full
        pl.BlockSpec(b1a.shape, const_map),         #   arrays, constant index
        pl.BlockSpec(w2.shape, const_map),          #   -> DMA'd once, VMEM-
        pl.BlockSpec(b2.shape, const_map),          #   resident across tiles
        pl.BlockSpec(w3.shape, const_map),
        pl.BlockSpec(b3.shape, const_map),
        pl.BlockSpec(wo.shape, const_map),
        pl.BlockSpec(bo.shape, const_map),
    ]
    out_spec = pl.BlockSpec((block_b, n_actions), batch_map)

    weight_bytes = sum(int(a.size) * a.dtype.itemsize
                       for a in (w1a, b1a, w2, b2, w3, b3, wo, bo))
    flops = 2 * B_pad * (n_in * 2 * h_pad + 2 * h_pad * h_pad + h_pad * n_actions)
    bytes_accessed = (int(x.size) * x.dtype.itemsize
                      + B_pad * n_actions * 4
                      + weight_bytes)

    out = pl.pallas_call(
        functools.partial(net_kernel, h_pad=h_pad),
        out_shape=jax.ShapeDtypeStruct((B_pad, n_actions), jnp.float32),
        grid=grid,
        in_specs=in_specs,
        out_specs=out_spec,
        compiler_params=pltpu.CompilerParams(
            dimension_semantics=("parallel",)),     # v7x: shard batch over 2 TCs
        cost_estimate=pl.CostEstimate(flops=flops, transcendentals=0,
                                      bytes_accessed=bytes_accessed),
    )(x, w1a, b1a, w2, b2, w3, b3, wo, bo)

    return out if B_pad == B else out[:B]


def make_params(key, n_states, n_actions, hidden_dim):
    """Deterministic synthetic parameters (torch.nn.Linear init, transposed to (in,out))."""
    ks = jax.random.split(key, 10)

    def linear(kw, kb, fan_in, fan_out):
        bound = 1.0 / jnp.sqrt(jnp.float32(fan_in))
        w = jax.random.uniform(kw, (fan_in, fan_out), jnp.float32, -bound, bound)
        b = jax.random.uniform(kb, (1, fan_out), jnp.float32, -bound, bound)
        return w, b

    w1, b1 = linear(ks[0], ks[1], n_states, hidden_dim)
    w2, b2 = linear(ks[2], ks[3], hidden_dim, hidden_dim)
    w3, b3 = linear(ks[4], ks[5], hidden_dim, hidden_dim)
    wa, ba = linear(ks[6], ks[7], n_actions * 2, hidden_dim)
    wo, bo = linear(ks[8], ks[9], hidden_dim, n_actions)
    return dict(w1=w1, b1=b1, w2=w2, b2=b2, w3=w3, b3=b3,
                wa=wa, ba=ba, wo=wo, bo=bo)


def reference_forward(states, actions, p, matmul_dtype=jnp.float32):
    """Pure-JAX reference; matmul_dtype lets us mirror the kernel's bf16 casts."""
    cdt = matmul_dtype

    def dense(x, w, b):
        return jnp.dot(x.astype(cdt), w.astype(cdt),
                       preferred_element_type=jnp.float32) + b

    relu = lambda t: jnp.maximum(t, 0.0)
    h = relu(dense(states, p["w1"], p["b1"]))
    h = relu(dense(h, p["w2"], p["b2"]))
    h = relu(dense(h, p["w3"], p["b3"]))
    ha = relu(dense(actions, p["wa"], p["ba"]))
    return dense(h + ha, p["wo"], p["bo"])


# TODO(synk): use_images=True branch (timm resnet50d backbone for fs) is not
# implemented; only the MLP state encoder path of the original module is covered.

if __name__ == "__main__":
    # Small shapes consistent with the module (use_images=False).
    B, n_states, n_actions, hidden_dim = 8, 16, 4, 32

    key = jax.random.PRNGKey(0)
    k_s, k_a, k_p = jax.random.split(key, 3)

    states = jax.random.normal(k_s, (B, n_states), jnp.float32)
    actions = jax.random.normal(k_a, (B, n_actions * 2), jnp.float32)
    params = make_params(k_p, n_states, n_actions, hidden_dim)

    out = net_forward(states, actions, params)       # bf16 MXU, f32 accumulate
    out = jax.block_until_ready(out)
    assert out.shape == (B, n_actions)

    # Check against a cast-matched reference (tight) and the pure-f32
    # reference (bf16-level tolerance).
    ref_bf16 = reference_forward(states, actions, params, matmul_dtype=jnp.bfloat16)
    ref_f32 = reference_forward(states, actions, params, matmul_dtype=jnp.float32)
    assert jnp.allclose(out, ref_bf16, atol=2e-3, rtol=2e-3), \
        "mismatch vs cast-matched (bf16) reference"
    assert jnp.allclose(out, ref_f32, atol=5e-2, rtol=5e-2), \
        "mismatch vs f32 reference beyond bf16 tolerance"

    print("KERNEL_OK")
</pallas_src>

<mosaic_0001>
module attributes {stable_mosaic.version = 11 : i64} {
  func.func @net_kernel(%arg0: i32, %arg1: memref<8x24xbf16, #tpu.memory_space<vmem>>, %arg2: memref<24x256xbf16, #tpu.memory_space<vmem>>, %arg3: memref<1x256xf32, #tpu.memory_space<vmem>>, %arg4: memref<128x128xbf16, #tpu.memory_space<vmem>>, %arg5: memref<1x128xf32, #tpu.memory_space<vmem>>, %arg6: memref<128x128xbf16, #tpu.memory_space<vmem>>, %arg7: memref<1x128xf32, #tpu.memory_space<vmem>>, %arg8: memref<128x4xbf16, #tpu.memory_space<vmem>>, %arg9: memref<1x4xf32, #tpu.memory_space<vmem>>, %arg10: memref<8x4xf32, #tpu.memory_space<vmem>>) attributes {dimension_semantics = [#tpu.dimension_semantics<parallel>], iteration_bounds = array<i64: 1>, scalar_prefetch = 0 : i64, scratch_operands = 0 : i64, tpu.core_type = #tpu.core_type<tc>, window_params = [{transform_indices = @transform_0, window_bounds = array<i64: 8, 24>}, {pipeline_mode = #tpu.pipeline_mode<synchronous>, transform_indices = @transform_1, window_bounds = array<i64: 24, 256>}, {pipeline_mode = #tpu.pipeline_mode<synchronous>, transform_indices = @transform_2, window_bounds = array<i64: 1, 256>}, {pipeline_mode = #tpu.pipeline_mode<synchronous>, transform_indices = @transform_3, window_bounds = array<i64: 128, 128>}, {pipeline_mode = #tpu.pipeline_mode<synchronous>, transform_indices = @transform_4, window_bounds = array<i64: 1, 128>}, {pipeline_mode = #tpu.pipeline_mode<synchronous>, transform_indices = @transform_5, window_bounds = array<i64: 128, 128>}, {pipeline_mode = #tpu.pipeline_mode<synchronous>, transform_indices = @transform_6, window_bounds = array<i64: 1, 128>}, {pipeline_mode = #tpu.pipeline_mode<synchronous>, transform_indices = @transform_7, window_bounds = array<i64: 128, 4>}, {pipeline_mode = #tpu.pipeline_mode<synchronous>, transform_indices = @transform_8, window_bounds = array<i64: 1, 4>}, {transform_indices = @transform_9, window_bounds = array<i64: 8, 4>}]} {
    %c0 = arith.constant 0 : index
    %c0_0 = arith.constant 0 : index
    %0 = vector.load %arg1[%c0, %c0_0] : memref<8x24xbf16, #tpu.memory_space<vmem>>, vector<8x24xbf16>
    %c0_1 = arith.constant 0 : index
    %c0_2 = arith.constant 0 : index
    %1 = vector.load %arg2[%c0_1, %c0_2] : memref<24x256xbf16, #tpu.memory_space<vmem>>, vector<24x256xbf16>
    %cst = arith.constant dense<0.000000e+00> : vector<8x256xf32>
    %2 = tpu.matmul %0, %1, %cst {dimension_numbers = #tpu.dot_dimension_numbers<[1], [0], [0], [1], [0, 0, 1, 1], [], []>} : vector<8x24xbf16>, vector<24x256xbf16>, vector<8x256xf32> -> vector<8x256xf32>
    %c0_3 = arith.constant 0 : index
    %c0_4 = arith.constant 0 : index
    %3 = vector.load %arg3[%c0_3, %c0_4] : memref<1x256xf32, #tpu.memory_space<vmem>>, vector<1x256xf32>
    %4 = vector.broadcast %3 : vector<1x256xf32> to vector<8x256xf32>
    %5 = arith.addf %2, %4 : vector<8x256xf32>
    %cst_5 = arith.constant 0.000000e+00 : f32
    %6 = vector.broadcast %cst_5 : f32 to vector<8x256xf32>
    %7 = arith.maximumf %5, %6 : vector<8x256xf32>
    %8 = vector.extract_strided_slice %7 {offsets = [0, 0], sizes = [8, 128], strides = [1, 1]} : vector<8x256xf32> to vector<8x128xf32>
    %9 = vector.extract_strided_slice %7 {offsets = [0, 128], sizes = [8, 128], strides = [1, 1]} : vector<8x256xf32> to vector<8x128xf32>
    %10 = arith.truncf %8 : vector<8x128xf32> to vector<8x128xbf16>
    %c0_6 = arith.constant 0 : index
    %c0_7 = arith.constant 0 : index
    %11 = vector.load %arg4[%c0_6, %c0_7] : memref<128x128xbf16, #tpu.memory_space<vmem>>, vector<128x128xbf16>
    %cst_8 = arith.constant dense<0.000000e+00> : vector<8x128xf32>
    %12 = tpu.matmul %10, %11, %cst_8 {dimension_numbers = #tpu.dot_dimension_numbers<[1], [0], [0], [1], [0, 0, 1, 1], [], []>} : vector<8x128xbf16>, vector<128x128xbf16>, vector<8x128xf32> -> vector<8x128xf32>
    %c0_9 = arith.constant 0 : index
    %c0_10 = arith.constant 0 : index
    %13 = vector.load %arg5[%c0_9, %c0_10] : memref<1x128xf32, #tpu.memory_space<vmem>>, vector<1x128xf32>
    %14 = vector.broadcast %13 : vector<1x128xf32> to vector<8x128xf32>
    %15 = arith.addf %12, %14 : vector<8x128xf32>
    %cst_11 = arith.constant 0.000000e+00 : f32
    %16 = vector.broadcast %cst_11 : f32 to vector<8x128xf32>
    %17 = arith.maximumf %15, %16 : vector<8x128xf32>
    %18 = arith.truncf %17 : vector<8x128xf32> to vector<8x128xbf16>
    %c0_12 = arith.constant 0 : index
    %c0_13 = arith.constant 0 : index
    %19 = vector.load %arg6[%c0_12, %c0_13] : memref<128x128xbf16, #tpu.memory_space<vmem>>, vector<128x128xbf16>
    %cst_14 = arith.constant dense<0.000000e+00> : vector<8x128xf32>
    %20 = tpu.matmul %18, %19, %cst_14 {dimension_numbers = #tpu.dot_dimension_numbers<[1], [0], [0], [1], [0, 0, 1, 1], [], []>} : vector<8x128xbf16>, vector<128x128xbf16>, vector<8x128xf32> -> vector<8x128xf32>
    %c0_15 = arith.constant 0 : index
    %c0_16 = arith.constant 0 : index
    %21 = vector.load %arg7[%c0_15, %c0_16] : memref<1x128xf32, #tpu.memory_space<vmem>>, vector<1x128xf32>
    %22 = vector.broadcast %21 : vector<1x128xf32> to vector<8x128xf32>
    %23 = arith.addf %20, %22 : vector<8x128xf32>
    %cst_17 = arith.constant 0.000000e+00 : f32
    %24 = vector.broadcast %cst_17 : f32 to vector<8x128xf32>
    %25 = arith.maximumf %23, %24 : vector<8x128xf32>
    %26 = arith.addf %25, %9 : vector<8x128xf32>
    %27 = arith.truncf %26 : vector<8x128xf32> to vector<8x128xbf16>
    %c0_18 = arith.constant 0 : index
    %c0_19 = arith.constant 0 : index
    %28 = vector.load %arg8[%c0_18, %c0_19] : memref<128x4xbf16, #tpu.memory_space<vmem>>, vector<128x4xbf16>
    %cst_20 = arith.constant dense<0.000000e+00> : vector<8x4xf32>
    %29 = tpu.matmul %27, %28, %cst_20 {dimension_numbers = #tpu.dot_dimension_numbers<[1], [0], [0], [1], [0, 0, 1, 1], [], []>} : vector<8x128xbf16>, vector<128x4xbf16>, vector<8x4xf32> -> vector<8x4xf32>
    %c0_21 = arith.constant 0 : index
    %c0_22 = arith.constant 0 : index
    %30 = vector.load %arg9[%c0_21, %c0_22] : memref<1x4xf32, #tpu.memory_space<vmem>>, vector<1x4xf32>
    %31 = vector.broadcast %30 : vector<1x4xf32> to vector<8x4xf32>
    %32 = arith.addf %29, %31 : vector<8x4xf32>
    %c0_23 = arith.constant 0 : index
    %c0_24 = arith.constant 0 : index
    %33 = vector.load %arg10[%c0_23, %c0_24] : memref<8x4xf32, #tpu.memory_space<vmem>>, vector<8x4xf32>
    tpu.vector_store %arg10[%c0_23, %c0_24], %32 {strides = array<i32>} : memref<8x4xf32, #tpu.memory_space<vmem>>, vector<8x4xf32>,
    return
  }
  func.func @transform_0(%arg0: i32) -> (i32, i32) {
    %c0_i32 = arith.constant 0 : i32
    %c0_i32_0 = arith.constant 0 : i32
    return %arg0, %c0_i32 : i32, i32
  }
  func.func @transform_1(%arg0: i32) -> (i32, i32) {
    %c0_i32 = arith.constant 0 : i32
    %c0_i32_0 = arith.constant 0 : i32
    %c0_i32_1 = arith.constant 0 : i32
    return %c0_i32, %c0_i32_0 : i32, i32
  }
  func.func @transform_2(%arg0: i32) -> (i32, i32) {
    %c0_i32 = arith.constant 0 : i32
    %c0_i32_0 = arith.constant 0 : i32
    %c0_i32_1 = arith.constant 0 : i32
    return %c0_i32, %c0_i32_0 : i32, i32
  }
  func.func @transform_3(%arg0: i32) -> (i32, i32) {
    %c0_i32 = arith.constant 0 : i32
    %c0_i32_0 = arith.constant 0 : i32
    %c0_i32_1 = arith.constant 0 : i32
    return %c0_i32, %c0_i32_0 : i32, i32
  }
  func.func @transform_4(%arg0: i32) -> (i32, i32) {
    %c0_i32 = arith.constant 0 : i32
    %c0_i32_0 = arith.constant 0 : i32
    %c0_i32_1 = arith.constant 0 : i32
    return %c0_i32, %c0_i32_0 : i32, i32
  }
  func.func @transform_5(%arg0: i32) -> (i32, i32) {
    %c0_i32 = arith.constant 0 : i32
    %c0_i32_0 = arith.constant 0 : i32
    %c0_i32_1 = arith.constant 0 : i32
    return %c0_i32, %c0_i32_0 : i32, i32
  }
  func.func @transform_6(%arg0: i32) -> (i32, i32) {
    %c0_i32 = arith.constant 0 : i32
    %c0_i32_0 = arith.constant 0 : i32
    %c0_i32_1 = arith.constant 0 : i32
    return %c0_i32, %c0_i32_0 : i32, i32
  }
  func.func @transform_7(%arg0: i32) -> (i32, i32) {
    %c0_i32 = arith.constant 0 : i32
    %c0_i32_0 = arith.constant 0 : i32
    %c0_i32_1 = arith.constant 0 : i32
    return %c0_i32, %c0_i32_0 : i32, i32
  }
  func.func @transform_8(%arg0: i32) -> (i32, i32) {
    %c0_i32 = arith.constant 0 : i32
    %c0_i32_0 = arith.constant 0 : i32
    %c0_i32_1 = arith.constant 0 : i32
    return %c0_i32, %c0_i32_0 : i32, i32
  }
  func.func @transform_9(%arg0: i32) -> (i32, i32) {
    %c0_i32 = arith.constant 0 : i32
    %c0_i32_0 = arith.constant 0 : i32
    return %arg0, %c0_i32 : i32, i32
  }
}

</mosaic_0001>

<llo_original>
// kernel: tpu_custom_call.1
$region0: #{tpu_custom_call.1}
  #allocation0 [shape = 'u32[]', space=smem, size = 0x4, offset = 0x4, fixed_abs, tag = 'smem constant byte address 0x4 - core index']
  #allocation1 [shape = 'u32[144,128]{1,0:T(1,128)}', space=vmem, size = 0x12000, scoped, tag = 'internal scratch']
  %s0 = inlined_call_operand.vmem [shape: bf16[8,24], index: 0, kind: input, shape index: {}]
  %s1 = inlined_call_operand.hbm [shape: bf16[24,256], index: 1, kind: input, shape index: {}]
  %s2 = inlined_call_operand.vmem [shape: f32[1,256], index: 2, kind: input, shape index: {}]
  %s3 = inlined_call_operand.vmem [shape: bf16[128,128], index: 3, kind: input, shape index: {}]
  %s4 = inlined_call_operand.vmem [shape: f32[1,128], index: 4, kind: input, shape index: {}]
  %s5 = inlined_call_operand.hbm [shape: bf16[128,128], index: 5, kind: input, shape index: {}]
  %s6 = inlined_call_operand.vmem [shape: f32[1,128], index: 6, kind: input, shape index: {}]
  %s7 = inlined_call_operand.vmem [shape: bf16[128,4], index: 7, kind: input, shape index: {}]
  %s8 = inlined_call_operand.vmem [shape: f32[1,4], index: 8, kind: input, shape index: {}]
  %s9 = inlined_call_operand.vmem [shape: f32[8,4], index: 9, kind: output, shape index: {}]
  %s10 = sld [smem:[#allocation0]]
  $region54: #{tpu_custom_call.1} parent=0
    _
  %s12 = ssub.s32 1, %s10
  %s13 = scalar_select 0, %s12, %s10
  $region1: #{tpu_custom_call.1} parent=0
    #allocation2 [shape = 'u8[12288]{0}', space=vmem, size = 0x3000, scoped, tag = 'input window, operand 1, single buffered']
    #allocation3 [shape = 's32[1]{0}', space=sflag, size = 0x4, scoped, tag = 'scoped memory for tpu_custom_call.1']
    #allocation4 [shape = 'u8[32768]{0}', space=vmem, size = 0x8000, scoped, tag = 'input window, operand 5, single buffered']
    #allocation5 [shape = 's32[1]{0}', space=sflag, size = 0x4, scoped, tag = 'scoped memory for tpu_custom_call.1']
    %14 = vsyncpa [#allocation3], 0
    %15 = vsyncpa [#allocation5], 0
    // Predicated region
    $region2: #{tpu_custom_call.1} parent=1 // pred_check
      _
    $region3: #{tpu_custom_call.1} parent=1 // pred_check_branch
      %17 = sbr.rel (0) target = $region5
    $region4: #{tpu_custom_call.1} parent=1 // pred_region
      _
    $region5: #{tpu_custom_call.1} parent=1 // pred_fallthru
      _
    // Predicated region
    $region6: #{tpu_custom_call.1} parent=1 // pred_check
      _
    $region7: #{tpu_custom_call.1} parent=1 // pred_check_branch
      %19 = sbr.rel (0) target = $region9
    $region8: #{tpu_custom_call.1} parent=1 // pred_region
      %s21 = ssub.s32 384, 384
      %22 = vsyncadd [#allocation3], %s21
      %s23 = sshll.u32 [#allocation2], 4
      %s24 = int_to_ptr.vmem [resolvable:$true] %s23
      %29 = dma.hbm_to_vmem [thread:$0]  %s1, 384, %s24, [#allocation3], 128, 128, 8
    $region9: #{tpu_custom_call.1} parent=1 // pred_fallthru
      _
    // Predicated region
    $region10: #{tpu_custom_call.1} parent=1 // pred_check
      _
    $region11: #{tpu_custom_call.1} parent=1 // pred_check_branch
      %31 = sbr.rel (0) target = $region13
    $region12: #{tpu_custom_call.1} parent=1 // pred_region
      _
    $region13: #{tpu_custom_call.1} parent=1 // pred_fallthru
      _
    // Predicated region
    $region14: #{tpu_custom_call.1} parent=1 // pred_check
      _
    $region15: #{tpu_custom_call.1} parent=1 // pred_check_branch
      %33 = sbr.rel (0) target = $region17
    $region16: #{tpu_custom_call.1} parent=1 // pred_region
      _
    $region17: #{tpu_custom_call.1} parent=1 // pred_fallthru
      _
    // Predicated region
    $region18: #{tpu_custom_call.1} parent=1 // pred_check
      _
    $region19: #{tpu_custom_call.1} parent=1 // pred_check_branch
      %35 = sbr.rel (0) target = $region21
    $region20: #{tpu_custom_call.1} parent=1 // pred_region
      _
    $region21: #{tpu_custom_call.1} parent=1 // pred_fallthru
      _
    // Predicated region
    $region22: #{tpu_custom_call.1} parent=1 // pred_check
      _
    $region23: #{tpu_custom_call.1} parent=1 // pred_check_branch
      %37 = sbr.rel (0) target = $region25
    $region24: #{tpu_custom_call.1} parent=1 // pred_region
      %s39 = ssub.s32 1024, 1024
      %40 = vsyncadd [#allocation5], %s39
      %s41 = sshll.u32 [#allocation4], 4
      %s42 = int_to_ptr.vmem [resolvable:$true] %s41
      %47 = dma.hbm_to_vmem [thread:$0]  %s5, 1024, %s42, [#allocation5], 64, 64, 4
    $region25: #{tpu_custom_call.1} parent=1 // pred_fallthru
      _
    // Predicated region
    $region26: #{tpu_custom_call.1} parent=1 // pred_check
      _
    $region27: #{tpu_custom_call.1} parent=1 // pred_check_branch
      %49 = sbr.rel (0) target = $region29
    $region28: #{tpu_custom_call.1} parent=1 // pred_region
      _
    $region29: #{tpu_custom_call.1} parent=1 // pred_fallthru
      _
    // Predicated region
    $region30: #{tpu_custom_call.1} parent=1 // pred_check
      _
    $region31: #{tpu_custom_call.1} parent=1 // pred_check_branch
      %51 = sbr.rel (0) target = $region33
    $region32: #{tpu_custom_call.1} parent=1 // pred_region
      _
    $region33: #{tpu_custom_call.1} parent=1 // pred_fallthru
      _
    // Predicated region
    $region34: #{tpu_custom_call.1} parent=1 // pred_check
      _
    $region35: #{tpu_custom_call.1} parent=1 // pred_check_branch
      %53 = sbr.rel (0) target = $region37
    $region36: #{tpu_custom_call.1} parent=1 // pred_region
      _
    $region37: #{tpu_custom_call.1} parent=1 // pred_fallthru
      _
    // Predicated region
    $region38: #{tpu_custom_call.1} parent=1 // pred_check
      _
    $region39: #{tpu_custom_call.1} parent=1 // pred_check_branch
      %55 = sbr.rel (0) target = $region41
    $region40: #{tpu_custom_call.1} parent=1 // pred_region
      %56 = dma.done [#allocation3], 384
    $region41: #{tpu_custom_call.1} parent=1 // pred_fallthru
      _
    // Predicated region
    $region42: #{tpu_custom_call.1} parent=1 // pred_check
      _
    $region43: #{tpu_custom_call.1} parent=1 // pred_check_branch
      %58 = sbr.rel (0) target = $region45
    $region44: #{tpu_custom_call.1} parent=1 // pred_region
      %59 = dma.done [#allocation5], 1024
    $region45: #{tpu_custom_call.1} parent=1 // pred_fallthru
      _
    %v61 = vld [vmem:[%s0] sm:$0xf]
    %v62 = vld [vmem:[#allocation2] sm:$0xff]
    %v63 = vld [vmem:[#allocation2 + $0x8] sm:$0xff]
    %v64 = vld [vmem:[#allocation2 + $0x10] sm:$0xff]
    %v65 = vld [vmem:[%s2] sm:$0x3]
    %v67 = vlaneseq
    %v68 = vshrl.u32 %v67, 7
    %v69 = vsub.s32 0, %v68
    %v70 = vrot.slane %v65, %v69
    %v71 = vlaneseq
    %v72 = vshrl.u32 %v71, 7
    %v73 = vsub.s32 1, %v72
    %v74 = vrot.slane %v65, %v73
    %v80 = vunpack.c.l.b16 %v62
    %v81 = vunpack.c.h.b16 %v62
    %v82 = vunpack.c.l.b16 %v63
    %v83 = vunpack.c.h.b16 %v63
    %v84 = vunpack.c.l.b16 %v64
    %v85 = vunpack.c.h.b16 %v64
    %v86 = vpack.c.b16 %v82, %v80
    %v87 = vpack.c.b16 %v83, %v81
    %v88 = vpack.c.b16 %v84, %v84
    %v89 = vpack.c.b16 %v85, %v85
    %vm92 = vcmask 195584
    %v94 = vsel %vm92, %v61, 0
    %vm96 = vcmask 1043456
    %v98 = vsel %vm96, %v88, 0
    %v101 = vsel %vm96, %v89, 0
    %103 = vmatprep.subr.bf16.mxu0 %v87
    %104 = vmatpush1.bf16.msra.mxu0 %v86
    %105 = vmatprep.subr.bf16.mxu0 %v101
    %106 = vmatpush1.bf16.msra.mxu0 %v98
    %107 = vmatprep.subr.bf16.mxu0 0
    %108 = vmatpush1.bf16.msra.mxu0 0
    %109 = vmatprep.subr.bf16.mxu0 0
    %110 = vmatpush1.bf16.msra.mxu0 0
    %111 = vmatprep.subr.bf16.mxu0 0
    %112 = vmatpush1.bf16.msra.mxu0 0
    %113 = vmatprep.subr.bf16.mxu0 0
    %114 = vmatpush1.bf16.msra.mxu0 0
    %115 = vmatprep.subr.bf16.mxu0 0
    %116 = vmatpush1.bf16.msra.mxu0 0
    %117 = vmatprep.subr.bf16.mxu0 0
    %118 = vmatpush1.bf16.msra.mxu0 0
    %119 = vmatprep.subr.bf16.mxu0 0
    %120 = vmatpush1.bf16.msra.mxu0 0
    %121 = vmatprep.subr.bf16.mxu0 0
    %122 = vmatpush1.bf16.msra.mxu0 0
    %123 = vmatprep.subr.bf16.mxu0 0
    %124 = vmatpush1.bf16.msra.mxu0 0
    %125 = vmatprep.subr.bf16.mxu0 0
    %126 = vmatpush1.bf16.msra.mxu0 0
    %127 = vmatprep.subr.bf16.mxu0 0
    %128 = vmatpush1.bf16.msra.mxu0 0
    %129 = vmatprep.subr.bf16.mxu0 0
    %130 = vmatpush1.bf16.msra.mxu0 0
    %131 = vmatprep.subr.bf16.mxu0 0
    %132 = vmatpush1.bf16.msra.mxu0 0
    %133 = vmatprep.subr.bf16.mxu0 0
    %134 = vmatpush1.bf16.msra.mxu0 0
    %135 = vmatprep.mubr.bf16.mxu0 0
    %136 = vmatmul.mubr.bf16.gmra.mrb[0].mxu0 %v94
    %v137 = vpop.f32.mrb[0].mxu0
    %v138 = vadd.f32 %v70, %v137
    %v139 = vpop.f32.mrb[0].mxu0
    %v140 = vadd.f32 %v74, %v139
    %v141 = vpop.f32.mrb[0].mxu0
    %v142 = vpop.f32.mrb[0].mxu0
    %143 = vdwg.mxu0
    %v144 = vmax.f32 %v138, 0.0
    %v145 = vmax.f32 %v140, 0.0
    %v146 = vpack.c.bf16 %v144, %v144
    %v147 = vld [vmem:[%s3] sm:$0xf]
    %v148 = vld [vmem:[%s3 + $0x4] sm:$0xf]
    %v149 = vld [vmem:[%s3 + $0x8] sm:$0xf]
    %v150 = vld [vmem:[%s3 + $0xc] sm:$0xf]
    %v151 = vld [vmem:[%s3 + $0x10] sm:$0xf]
    %v152 = vld [vmem:[%s3 + $0x14] sm:$0xf]
    %v153 = vld [vmem:[%s3 + $0x18] sm:$0xf]
    %v154 = vld [vmem:[%s3 + $0x1c] sm:$0xf]
    %v155 = vld [vmem:[%s3 + $0x20] sm:$0xf]
    %v156 = vld [vmem:[%s3 + $0x24] sm:$0xf]
    %v157 = vld [vmem:[%s3 + $0x28] sm:$0xf]
    %v158 = vld [vmem:[%s3 + $0x2c] sm:$0xf]
    %v159 = vld [vmem:[%s3 + $0x30] sm:$0xf]
    %v160 = vld [vmem:[%s3 + $0x34] sm:$0xf]
    %v161 = vld [vmem:[%s3 + $0x38] sm:$0xf]
    %v162 = vld [vmem:[%s3 + $0x3c] sm:$0xf]
    %v163 = vld [vmem:[%s4] sm:$0x1]
    %v165 = vlaneseq
    %v166 = vshrl.u32 %v165, 7
    %v167 = vsub.s32 0, %v166
    %v168 = vrot.slane %v163, %v167
    %v186 = vunpack.c.l.b16 %v147
    %v187 = vunpack.c.l.b16 %v148
    %v188 = vunpack.c.l.b16 %v149
    %v189 = vunpack.c.l.b16 %v150
    %v190 = vunpack.c.l.b16 %v151
    %v191 = vunpack.c.l.b16 %v152
    %v192 = vunpack.c.l.b16 %v153
    %v193 = vunpack.c.l.b16 %v154
    %v194 = vunpack.c.l.b16 %v155
    %v195 = vunpack.c.l.b16 %v156
    %v196 = vunpack.c.l.b16 %v157
    %v197 = vunpack.c.l.b16 %v158
    %v198 = vunpack.c.l.b16 %v159
    %v199 = vunpack.c.l.b16 %v160
    %v200 = vunpack.c.l.b16 %v161
    %v201 = vunpack.c.l.b16 %v162
    %v202 = vpack.c.b16 %v187, %v186
    %v203 = vpack.c.b16 %v189, %v188
    %v204 = vpack.c.b16 %v191, %v190
    %v205 = vpack.c.b16 %v193, %v192
    %v206 = vpack.c.b16 %v195, %v194
    %v207 = vpack.c.b16 %v197, %v196
    %v208 = vpack.c.b16 %v199, %v198
    %v209 = vpack.c.b16 %v201, %v200
    %218 = vmatprep.subr.bf16.mxu0 0
    %219 = vmatpush1.bf16.msra.mxu0 %v202
    %220 = vmatprep.subr.bf16.mxu0 0
    %221 = vmatpush1.bf16.msra.mxu0 %v203
    %222 = vmatprep.subr.bf16.mxu0 0
    %223 = vmatpush1.bf16.msra.mxu0 %v204
    %224 = vmatprep.subr.bf16.mxu0 0
    %225 = vmatpush1.bf16.msra.mxu0 %v205
    %226 = vmatprep.subr.bf16.mxu0 0
    %227 = vmatpush1.bf16.msra.mxu0 %v206
    %228 = vmatprep.subr.bf16.mxu0 0
    %229 = vmatpush1.bf16.msra.mxu0 %v207
    %230 = vmatprep.subr.bf16.mxu0 0
    %231 = vmatpush1.bf16.msra.mxu0 %v208
    %232 = vmatprep.subr.bf16.mxu0 0
    %233 = vmatpush1.bf16.msra.mxu0 %v209
    %234 = vmatprep.subr.bf16.mxu0 0
    %235 = vmatpush1.bf16.msra.mxu0 0
    %236 = vmatprep.subr.bf16.mxu0 0
    %237 = vmatpush1.bf16.msra.mxu0 0
    %238 = vmatprep.subr.bf16.mxu0 0
    %239 = vmatpush1.bf16.msra.mxu0 0
    %240 = vmatprep.subr.bf16.mxu0 0
    %241 = vmatpush1.bf16.msra.mxu0 0
    %242 = vmatprep.subr.bf16.mxu0 0
    %243 = vmatpush1.bf16.msra.mxu0 0
    %244 = vmatprep.subr.bf16.mxu0 0
    %245 = vmatpush1.bf16.msra.mxu0 0
    %246 = vmatprep.subr.bf16.mxu0 0
    %247 = vmatpush1.bf16.msra.mxu0 0
    %248 = vmatprep.subr.bf16.mxu0 0
    %249 = vmatpush1.bf16.msra.mxu0 0
    %250 = vmatprep.mubr.bf16.mxu0 0
    %251 = vmatmul.mubr.bf16.gmra.mrb[0].mxu0 %v146
    %v252 = vpop.f32.mrb[0].mxu0
    %v253 = vadd.f32 %v168, %v252
    %v254 = vpop.f32.mrb[0].mxu0
    %v255 = vpop.f32.mrb[0].mxu0
    %v256 = vpop.f32.mrb[0].mxu0
    %257 = vdwg.mxu0
    %v258 = vmax.f32 %v253, 0.0
    %v259 = vpack.c.bf16 %v258, %v258
    %v260 = vld [vmem:[#allocation4] sm:$0xf]
    %v261 = vld [vmem:[#allocation4 + $0x4] sm:$0xf]
    %v262 = vld [vmem:[#allocation4 + $0x8] sm:$0xf]
    %v263 = vld [vmem:[#allocation4 + $0xc] sm:$0xf]
    %v264 = vld [vmem:[#allocation4 + $0x10] sm:$0xf]
    %v265 = vld [vmem:[#allocation4 + $0x14] sm:$0xf]
    %v266 = vld [vmem:[#allocation4 + $0x18] sm:$0xf]
    %v267 = vld [vmem:[#allocation4 + $0x1c] sm:$0xf]
    %v268 = vld [vmem:[#allocation4 + $0x20] sm:$0xf]
    %v269 = vld [vmem:[#allocation4 + $0x24] sm:$0xf]
    %v270 = vld [vmem:[#allocation4 + $0x28] sm:$0xf]
    %v271 = vld [vmem:[#allocation4 + $0x2c] sm:$0xf]
    %v272 = vld [vmem:[#allocation4 + $0x30] sm:$0xf]
    %v273 = vld [vmem:[#allocation4 + $0x34] sm:$0xf]
    %v274 = vld [vmem:[#allocation4 + $0x38] sm:$0xf]
    %v275 = vld [vmem:[#allocation4 + $0x3c] sm:$0xf]
    %v276 = vld [vmem:[%s6] sm:$0x1]
    %v278 = vlaneseq
    %v279 = vshrl.u32 %v278, 7
    %v280 = vsub.s32 0, %v279
    %v281 = vrot.slane %v276, %v280
    %v299 = vunpack.c.l.b16 %v260
    %v300 = vunpack.c.l.b16 %v261
    %v301 = vunpack.c.l.b16 %v262
    %v302 = vunpack.c.l.b16 %v263
    %v303 = vunpack.c.l.b16 %v264
    %v304 = vunpack.c.l.b16 %v265
    %v305 = vunpack.c.l.b16 %v266
    %v306 = vunpack.c.l.b16 %v267
    %v307 = vunpack.c.l.b16 %v268
    %v308 = vunpack.c.l.b16 %v269
    %v309 = vunpack.c.l.b16 %v270
    %v310 = vunpack.c.l.b16 %v271
    %v311 = vunpack.c.l.b16 %v272
    %v312 = vunpack.c.l.b16 %v273
    %v313 = vunpack.c.l.b16 %v274
    %v314 = vunpack.c.l.b16 %v275
    %v315 = vpack.c.b16 %v300, %v299
    %v316 = vpack.c.b16 %v302, %v301
    %v317 = vpack.c.b16 %v304, %v303
    %v318 = vpack.c.b16 %v306, %v305
    %v319 = vpack.c.b16 %v308, %v307
    %v320 = vpack.c.b16 %v310, %v309
    %v321 = vpack.c.b16 %v312, %v311
    %v322 = vpack.c.b16 %v314, %v313
    %331 = vmatprep.subr.bf16.mxu0 0
    %332 = vmatpush1.bf16.msra.mxu0 %v315
    %333 = vmatprep.subr.bf16.mxu0 0
    %334 = vmatpush1.bf16.msra.mxu0 %v316
    %335 = vmatprep.subr.bf16.mxu0 0
    %336 = vmatpush1.bf16.msra.mxu0 %v317
    %337 = vmatprep.subr.bf16.mxu0 0
    %338 = vmatpush1.bf16.msra.mxu0 %v318
    %339 = vmatprep.subr.bf16.mxu0 0
    %340 = vmatpush1.bf16.msra.mxu0 %v319
    %341 = vmatprep.subr.bf16.mxu0 0
    %342 = vmatpush1.bf16.msra.mxu0 %v320
    %343 = vmatprep.subr.bf16.mxu0 0
    %344 = vmatpush1.bf16.msra.mxu0 %v321
    %345 = vmatprep.subr.bf16.mxu0 0
    %346 = vmatpush1.bf16.msra.mxu0 %v322
    %347 = vmatprep.subr.bf16.mxu0 0
    %348 = vmatpush1.bf16.msra.mxu0 0
    %349 = vmatprep.subr.bf16.mxu0 0
    %350 = vmatpush1.bf16.msra.mxu0 0
    %351 = vmatprep.subr.bf16.mxu0 0
    %352 = vmatpush1.bf16.msra.mxu0 0
    %353 = vmatprep.subr.bf16.mxu0 0
    %354 = vmatpush1.bf16.msra.mxu0 0
    %355 = vmatprep.subr.bf16.mxu0 0
    %356 = vmatpush1.bf16.msra.mxu0 0
    %357 = vmatprep.subr.bf16.mxu0 0
    %358 = vmatpush1.bf16.msra.mxu0 0
    %359 = vmatprep.subr.bf16.mxu0 0
    %360 = vmatpush1.bf16.msra.mxu0 0
    %361 = vmatprep.subr.bf16.mxu0 0
    %362 = vmatpush1.bf16.msra.mxu0 0
    %363 = vmatprep.mubr.bf16.mxu0 0
    %364 = vmatmul.mubr.bf16.gmra.mrb[0].mxu0 %v259
    %v365 = vpop.f32.mrb[0].mxu0
    %v366 = vadd.f32 %v281, %v365
    %v367 = vpop.f32.mrb[0].mxu0
    %v368 = vpop.f32.mrb[0].mxu0
    %v369 = vpop.f32.mrb[0].mxu0
    %370 = vdwg.mxu0
    %v371 = vmax.f32 %v366, 0.0
    %v372 = vadd.f32 %v371, %v145
    %v373 = vpack.c.bf16 %v372, %v372
    %v374 = vld [vmem:[%s7] sm:$0xf]
    %v375 = vld [vmem:[%s7 + $0x4] sm:$0xf]
    %v376 = vld [vmem:[%s7 + $0x8] sm:$0xf]
    %v377 = vld [vmem:[%s7 + $0xc] sm:$0xf]
    %v378 = vld [vmem:[%s7 + $0x10] sm:$0xf]
    %v379 = vld [vmem:[%s7 + $0x14] sm:$0xf]
    %v380 = vld [vmem:[%s7 + $0x18] sm:$0xf]
    %v381 = vld [vmem:[%s7 + $0x1c] sm:$0xf]
    %v382 = vld [vmem:[%s7 + $0x20] sm:$0xf]
    %v383 = vld [vmem:[%s7 + $0x24] sm:$0xf]
    %v384 = vld [vmem:[%s7 + $0x28] sm:$0xf]
    %v385 = vld [vmem:[%s7 + $0x2c] sm:$0xf]
    %v386 = vld [vmem:[%s7 + $0x30] sm:$0xf]
    %v387 = vld [vmem:[%s7 + $0x34] sm:$0xf]
    %v388 = vld [vmem:[%s7 + $0x38] sm:$0xf]
    %v389 = vld [vmem:[%s7 + $0x3c] sm:$0xf]
    %v390 = vld [vmem:[%s8] sm:$0x1]
    %v392 = vlaneseq
    %v393 = vshrl.u32 %v392, 7
    %v394 = vsub.s32 0, %v393
    %v395 = vrot.slane %v390, %v394
    %v413 = vunpack.c.l.b16 %v374
    %v414 = vunpack.c.l.b16 %v375
    %v415 = vunpack.c.l.b16 %v376
    %v416 = vunpack.c.l.b16 %v377
    %v417 = vunpack.c.l.b16 %v378
    %v418 = vunpack.c.l.b16 %v379
    %v419 = vunpack.c.l.b16 %v380
    %v420 = vunpack.c.l.b16 %v381
    %v421 = vunpack.c.l.b16 %v382
    %v422 = vunpack.c.l.b16 %v383
    %v423 = vunpack.c.l.b16 %v384
    %v424 = vunpack.c.l.b16 %v385
    %v425 = vunpack.c.l.b16 %v386
    %v426 = vunpack.c.l.b16 %v387
    %v427 = vunpack.c.l.b16 %v388
    %v428 = vunpack.c.l.b16 %v389
    %v429 = vpack.c.b16 %v414, %v413
    %v430 = vpack.c.b16 %v416, %v415
    %v431 = vpack.c.b16 %v418, %v417
    %v432 = vpack.c.b16 %v420, %v419
    %v433 = vpack.c.b16 %v422, %v421
    %v434 = vpack.c.b16 %v424, %v423
    %v435 = vpack.c.b16 %v426, %v425
    %v436 = vpack.c.b16 %v428, %v427
    %445 = vmatprep.subr.bf16.mxu0 0
    %446 = vmatpush1.bf16.msra.mxu0 %v429
    %447 = vmatprep.subr.bf16.mxu0 0
    %448 = vmatpush1.bf16.msra.mxu0 %v430
    %449 = vmatprep.subr.bf16.mxu0 0
    %450 = vmatpush1.bf16.msra.mxu0 %v431
    %451 = vmatprep.subr.bf16.mxu0 0
    %452 = vmatpush1.bf16.msra.mxu0 %v432
    %453 = vmatprep.subr.bf16.mxu0 0
    %454 = vmatpush1.bf16.msra.mxu0 %v433
    %455 = vmatprep.subr.bf16.mxu0 0
    %456 = vmatpush1.bf16.msra.mxu0 %v434
    %457 = vmatprep.subr.bf16.mxu0 0
    %458 = vmatpush1.bf16.msra.mxu0 %v435
    %459 = vmatprep.subr.bf16.mxu0 0
    %460 = vmatpush1.bf16.msra.mxu0 %v436
    %461 = vmatprep.subr.bf16.mxu0 0
    %462 = vmatpush1.bf16.msra.mxu0 0
    %463 = vmatprep.subr.bf16.mxu0 0
    %464 = vmatpush1.bf16.msra.mxu0 0
    %465 = vmatprep.subr.bf16.mxu0 0
    %466 = vmatpush1.bf16.msra.mxu0 0
    %467 = vmatprep.subr.bf16.mxu0 0
    %468 = vmatpush1.bf16.msra.mxu0 0
    %469 = vmatprep.subr.bf16.mxu0 0
    %470 = vmatpush1.bf16.msra.mxu0 0
    %471 = vmatprep.subr.bf16.mxu0 0
    %472 = vmatpush1.bf16.msra.mxu0 0
    %473 = vmatprep.subr.bf16.mxu0 0
    %474 = vmatpush1.bf16.msra.mxu0 0
    %475 = vmatprep.subr.bf16.mxu0 0
    %476 = vmatpush1.bf16.msra.mxu0 0
    %477 = vmatprep.mubr.bf16.mxu0 0
    %478 = vmatmul.mubr.bf16.gmra.mrb[0].mxu0 %v373
    %v479 = vpop.f32.mrb[0].mxu0
    %v480 = vadd.f32 %v395, %v479
    %v481 = vpop.f32.mrb[0].mxu0
    %v482 = vpop.f32.mrb[0].mxu0
    %v483 = vpop.f32.mrb[0].mxu0
    %484 = vdwg.mxu0
    %vm485 = vcmask 31744
    %486 = vst.msk [vmem:[%s9] sm:$0xff] %vm485, %v480
    // Predicated region
    $region46: #{tpu_custom_call.1} parent=1 // pred_check
      _
    $region47: #{tpu_custom_call.1} parent=1 // pred_check_branch
      %488 = sbr.rel (0) target = $region49
    $region48: #{tpu_custom_call.1} parent=1 // pred_region
      _
    $region49: #{tpu_custom_call.1} parent=1 // pred_fallthru
      _
    // Predicated region
    $region50: #{tpu_custom_call.1} parent=1 // pred_check
      _
    $region51: #{tpu_custom_call.1} parent=1 // pred_check_branch
      %490 = sbr.rel (0) target = $region53
    $region52: #{tpu_custom_call.1} parent=1 // pred_region
      _
    $region53: #{tpu_custom_call.1} parent=1 // pred_fallthru
      _
    %491 = vsyncpa [#allocation3], 1
    %492 = vsyncpa [#allocation5], 1

</llo_original>
